<compile_context>
chip_gen: v7x
topology: tpu7x:2x2x1
jax: 0.10.0
libtpu: 0.0.40
codegen_flags: <defaults>
</compile_context>

<pallas_src>
import functools

import jax
import jax.numpy as jnp
from jax.experimental import pallas as pl
from jax.experimental.pallas import tpu as pltpu


def _mlp_kernel(x_ref, w1_ref, w2_ref, w3_ref, vec_ref, o_ref, *, dim):
    """Fused (lin1+BN1 folded) -> ReLU -> (lin2+BN2 folded) -> ReLU -> lin3 -> sigmoid."""
    x = x_ref[...].astype(jnp.bfloat16)

    shift1 = vec_ref[0:1, :dim]          # folded b1*scale1 + bn1_shift  (f32)
    shift2 = vec_ref[1:2, :dim]          # folded b2*scale2 + bn2_shift  (f32)
    b3 = vec_ref[2:3, :]                 # lin3 bias, zero-padded to P_pad (f32)

    # ---- layer 1 (BN folded into w1 / shift1; dropout = identity in eval) ----
    h = jnp.dot(x, w1_ref[...], preferred_element_type=jnp.float32) + shift1
    h = jnp.maximum(h, 0.0)

    # ---- layer 2 ----
    h = jnp.dot(h.astype(jnp.bfloat16), w2_ref[...],
                preferred_element_type=jnp.float32) + shift2
    h = jnp.maximum(h, 0.0)

    # ---- layer 3 + sigmoid (exp + approx reciprocal stay on the EUP slot) ----
    y = jnp.dot(h.astype(jnp.bfloat16), w3_ref[...],
                preferred_element_type=jnp.float32) + b3
    o_ref[...] = pl.reciprocal(1.0 + jnp.exp(-y), approx=True).astype(o_ref.dtype)


def audio_rep_to_params(x, fp, nparams, *, block_batch=None):
    """x: (B, dim) float32.  fp: folded/packed params from fold_params()."""
    B, D = x.shape
    P_pad = fp["w3"].shape[1]

    # Batch tile: large enough to amortize per-step overhead, capped so the
    # grid has multiple steps for big batches (megacore / pipelining).
    if block_batch is None:
        tb = B if B <= 512 else 512
    else:
        tb = block_batch

    # Ragged-batch handling: zero-pad rows to a tile multiple, slice afterwards.
    B_pad = pl.cdiv(B, tb) * tb
    if B_pad != B:
        x = jnp.pad(x, ((0, B_pad - B), (0, 0)))

    grid = (B_pad // tb,)
    full = lambda i: (0, 0)   # weights / packed vectors are resident every step

    out = pl.pallas_call(
        functools.partial(_mlp_kernel, dim=D),
        out_shape=jax.ShapeDtypeStruct((B_pad, P_pad), jnp.float32),
        grid_spec=pl.GridSpec(
            grid=grid,
            in_specs=[
                pl.BlockSpec((tb, D), lambda i: (i, 0)),       # x tile
                pl.BlockSpec((D, D), full),                    # w1 (bf16, BN folded)
                pl.BlockSpec((D, D), full),                    # w2 (bf16, BN folded)
                pl.BlockSpec((D, P_pad), full),                # w3 (bf16, lane-padded)
                pl.BlockSpec((3, P_pad), full),                # packed shift1/shift2/b3
            ],
            out_specs=pl.BlockSpec((tb, P_pad), lambda i: (i, 0)),
        ),
        compiler_params=pltpu.CompilerParams(
            dimension_semantics=("parallel",)),
    )(x, fp["w1"], fp["w2"], fp["w3"], fp["vec"])

    return out[:B, :nparams]


def fold_params(p, dim, nparams):
    """Fold eval-mode BN into weights, pad lin3 lane-dense, pack small vectors.

    Inputs are the "PyTorch-layout-derived" params (weights pre-transposed to
    (in, out), BN already expressed as per-feature scale/shift).
    """
    p_pad = max(128, ((nparams + 127) // 128) * 128)

    # y = (x@w + b)*scale + shift  ==  x@(w*scale) + (b*scale + shift)
    w1f = (p["w1"] * p["bn1_scale"]).astype(jnp.bfloat16)
    w2f = (p["w2"] * p["bn2_scale"]).astype(jnp.bfloat16)
    shift1 = p["b1"] * p["bn1_scale"] + p["bn1_shift"]          # (1, dim) f32
    shift2 = p["b2"] * p["bn2_scale"] + p["bn2_shift"]          # (1, dim) f32

    # Lane-dense final layer: pad output features to a multiple of 128.
    w3f = jnp.zeros((dim, p_pad), jnp.float32).at[:, :nparams].set(p["w3"])
    w3f = w3f.astype(jnp.bfloat16)
    b3f = jnp.zeros((1, p_pad), jnp.float32).at[:, :nparams].set(p["b3"])

    # Pack the three per-feature vectors into one (3, p_pad) f32 operand.
    pad_to = lambda v: jnp.zeros((1, p_pad), jnp.float32).at[:, :dim].set(v)
    vec = jnp.concatenate([pad_to(shift1), pad_to(shift2), b3f], axis=0)

    return {"w1": w1f, "w2": w2f, "w3": w3f, "vec": vec}


def _make_params(key, dim, nparams, hidden_norm="nn.BatchNorm1d", eps=1e-5):
    """Deterministic synthetic parameters matching the nn.Module's shapes.

    PyTorch Linear weight is (out, in); we store the transpose (in, out).
    BatchNorm1d (eval) expressed as per-feature scale/shift:
        scale = gamma / sqrt(running_var + eps),  shift = beta - running_mean * scale
    """
    ks = jax.random.split(key, 16)
    uni = lambda k, shape, s: jax.random.uniform(k, shape, jnp.float32, -s, s)

    p = {}
    p["w1"] = uni(ks[0], (dim, dim), 1.0 / jnp.sqrt(dim)).astype(jnp.float32)
    p["b1"] = uni(ks[1], (1, dim), 1.0 / jnp.sqrt(dim)).astype(jnp.float32)
    p["w2"] = uni(ks[2], (dim, dim), 1.0 / jnp.sqrt(dim)).astype(jnp.float32)
    p["b2"] = uni(ks[3], (1, dim), 1.0 / jnp.sqrt(dim)).astype(jnp.float32)
    p["w3"] = uni(ks[4], (dim, nparams), 1.0 / jnp.sqrt(dim)).astype(jnp.float32)
    p["b3"] = uni(ks[5], (1, nparams), 1.0 / jnp.sqrt(dim)).astype(jnp.float32)

    if hidden_norm == "nn.BatchNorm1d":
        for idx, (kg, kb, km, kv) in enumerate(((ks[6], ks[7], ks[8], ks[9]),
                                                (ks[10], ks[11], ks[12], ks[13])), 1):
            gamma = 1.0 + 0.1 * uni(kg, (1, dim), 1.0)
            beta = 0.1 * uni(kb, (1, dim), 1.0)
            rmean = 0.1 * uni(km, (1, dim), 1.0)
            rvar = 1.0 + 0.1 * jax.random.uniform(kv, (1, dim), jnp.float32)
            scale = gamma / jnp.sqrt(rvar + eps)
            shift = beta - rmean * scale
            p[f"bn{idx}_scale"] = scale.astype(jnp.float32)
            p[f"bn{idx}_shift"] = shift.astype(jnp.float32)
    elif hidden_norm == "nn.Identity":
        for idx in (1, 2):
            p[f"bn{idx}_scale"] = jnp.ones((1, dim), jnp.float32)
            p[f"bn{idx}_shift"] = jnp.zeros((1, dim), jnp.float32)
    else:
        raise AssertionError(hidden_norm)
    return p


def _reference(x, p):
    """Pure-JAX f32 reference of the module's eval-mode forward."""
    h = x @ p["w1"] + p["b1"]
    h = h * p["bn1_scale"] + p["bn1_shift"]
    h = jnp.maximum(h, 0.0)
    h = h @ p["w2"] + p["b2"]
    h = h * p["bn2_scale"] + p["bn2_shift"]
    h = jnp.maximum(h, 0.0)
    y = h @ p["w3"] + p["b3"]
    return jax.nn.sigmoid(y)


if __name__ == "__main__":
    # Small shapes consistent with the module: batch=8, dim=32, nparams=16.
    B, DIM, NPARAMS = 8, 32, 16
    key = jax.random.PRNGKey(0)
    kx, kp = jax.random.split(key)

    x = jax.random.normal(kx, (B, DIM), jnp.float32)
    params = _make_params(kp, DIM, NPARAMS, hidden_norm="nn.BatchNorm1d")
    folded = fold_params(params, DIM, NPARAMS)

    out = audio_rep_to_params(x, folded, NPARAMS)
    out = jax.block_until_ready(out)

    ref = _reference(x, params)
    assert out.shape == (B, NPARAMS), out.shape
    # bf16 MXU matmuls + approx reciprocal vs f32 reference -> relaxed tolerance.
    max_err = float(jnp.max(jnp.abs(out - ref)))
    assert max_err < 3e-2, max_err

    print("KERNEL_OK")
</pallas_src>

<mosaic_0001>
module attributes {stable_mosaic.version = 11 : i64} {
  func.func @_mlp_kernel(%arg0: i32, %arg1: memref<8x32xf32, #tpu.memory_space<vmem>>, %arg2: memref<32x32xbf16, #tpu.memory_space<vmem>>, %arg3: memref<32x32xbf16, #tpu.memory_space<vmem>>, %arg4: memref<32x128xbf16, #tpu.memory_space<vmem>>, %arg5: memref<3x128xf32, #tpu.memory_space<vmem>>, %arg6: memref<8x128xf32, #tpu.memory_space<vmem>>) attributes {dimension_semantics = [#tpu.dimension_semantics<parallel>], iteration_bounds = array<i64: 1>, scalar_prefetch = 0 : i64, scratch_operands = 0 : i64, tpu.core_type = #tpu.core_type<tc>, window_params = [{transform_indices = @transform_0, window_bounds = array<i64: 8, 32>}, {pipeline_mode = #tpu.pipeline_mode<synchronous>, transform_indices = @transform_1, window_bounds = array<i64: 32, 32>}, {pipeline_mode = #tpu.pipeline_mode<synchronous>, transform_indices = @transform_2, window_bounds = array<i64: 32, 32>}, {pipeline_mode = #tpu.pipeline_mode<synchronous>, transform_indices = @transform_3, window_bounds = array<i64: 32, 128>}, {pipeline_mode = #tpu.pipeline_mode<synchronous>, transform_indices = @transform_4, window_bounds = array<i64: 3, 128>}, {transform_indices = @transform_5, window_bounds = array<i64: 8, 128>}]} {
    %c0 = arith.constant 0 : index
    %c0_0 = arith.constant 0 : index
    %0 = vector.load %arg1[%c0, %c0_0] : memref<8x32xf32, #tpu.memory_space<vmem>>, vector<8x32xf32>
    %1 = arith.truncf %0 : vector<8x32xf32> to vector<8x32xbf16>
    %c0_1 = arith.constant 0 : index
    %c0_2 = arith.constant 0 : index
    %2 = vector.load %arg5[%c0_1, %c0_2] : memref<3x128xf32, #tpu.memory_space<vmem>>, vector<1x32xf32>
    %c1 = arith.constant 1 : index
    %c0_3 = arith.constant 0 : index
    %3 = vector.load %arg5[%c1, %c0_3] : memref<3x128xf32, #tpu.memory_space<vmem>>, vector<1x32xf32>
    %c2 = arith.constant 2 : index
    %c0_4 = arith.constant 0 : index
    %4 = vector.load %arg5[%c2, %c0_4] : memref<3x128xf32, #tpu.memory_space<vmem>>, vector<1x128xf32>
    %c0_5 = arith.constant 0 : index
    %c0_6 = arith.constant 0 : index
    %5 = vector.load %arg2[%c0_5, %c0_6] : memref<32x32xbf16, #tpu.memory_space<vmem>>, vector<32x32xbf16>
    %cst = arith.constant dense<0.000000e+00> : vector<8x32xf32>
    %6 = tpu.matmul %1, %5, %cst {dimension_numbers = #tpu.dot_dimension_numbers<[1], [0], [0], [1], [0, 0, 1, 1], [], []>} : vector<8x32xbf16>, vector<32x32xbf16>, vector<8x32xf32> -> vector<8x32xf32>
    %7 = vector.broadcast %2 : vector<1x32xf32> to vector<8x32xf32>
    %8 = arith.addf %6, %7 : vector<8x32xf32>
    %cst_7 = arith.constant 0.000000e+00 : f32
    %9 = vector.broadcast %cst_7 : f32 to vector<8x32xf32>
    %10 = arith.maximumf %8, %9 : vector<8x32xf32>
    %11 = arith.truncf %10 : vector<8x32xf32> to vector<8x32xbf16>
    %c0_8 = arith.constant 0 : index
    %c0_9 = arith.constant 0 : index
    %12 = vector.load %arg3[%c0_8, %c0_9] : memref<32x32xbf16, #tpu.memory_space<vmem>>, vector<32x32xbf16>
    %cst_10 = arith.constant dense<0.000000e+00> : vector<8x32xf32>
    %13 = tpu.matmul %11, %12, %cst_10 {dimension_numbers = #tpu.dot_dimension_numbers<[1], [0], [0], [1], [0, 0, 1, 1], [], []>} : vector<8x32xbf16>, vector<32x32xbf16>, vector<8x32xf32> -> vector<8x32xf32>
    %14 = vector.broadcast %3 : vector<1x32xf32> to vector<8x32xf32>
    %15 = arith.addf %13, %14 : vector<8x32xf32>
    %cst_11 = arith.constant 0.000000e+00 : f32
    %16 = vector.broadcast %cst_11 : f32 to vector<8x32xf32>
    %17 = arith.maximumf %15, %16 : vector<8x32xf32>
    %18 = arith.truncf %17 : vector<8x32xf32> to vector<8x32xbf16>
    %c0_12 = arith.constant 0 : index
    %c0_13 = arith.constant 0 : index
    %19 = vector.load %arg4[%c0_12, %c0_13] : memref<32x128xbf16, #tpu.memory_space<vmem>>, vector<32x128xbf16>
    %cst_14 = arith.constant dense<0.000000e+00> : vector<8x128xf32>
    %20 = tpu.matmul %18, %19, %cst_14 {dimension_numbers = #tpu.dot_dimension_numbers<[1], [0], [0], [1], [0, 0, 1, 1], [], []>} : vector<8x32xbf16>, vector<32x128xbf16>, vector<8x128xf32> -> vector<8x128xf32>
    %21 = vector.broadcast %4 : vector<1x128xf32> to vector<8x128xf32>
    %22 = arith.addf %20, %21 : vector<8x128xf32>
    %cst_15 = arith.constant 0.000000e+00 : f32
    %23 = vector.broadcast %cst_15 : f32 to vector<8x128xf32>
    %24 = arith.subf %23, %22 : vector<8x128xf32>
    %25 = math.exp %24 : vector<8x128xf32>
    %cst_16 = arith.constant 1.000000e+00 : f32
    %26 = vector.broadcast %cst_16 : f32 to vector<8x128xf32>
    %27 = arith.addf %26, %25 : vector<8x128xf32>
    %28 = tpu.reciprocal %27 {approx = true} : vector<8x128xf32> -> vector<8x128xf32>
    %c0_17 = arith.constant 0 : index
    %c0_18 = arith.constant 0 : index
    %29 = vector.load %arg6[%c0_17, %c0_18] : memref<8x128xf32, #tpu.memory_space<vmem>>, vector<8x128xf32>
    tpu.vector_store %arg6[%c0_17, %c0_18], %28 {strides = array<i32>} : memref<8x128xf32, #tpu.memory_space<vmem>>, vector<8x128xf32>,
    return
  }
  func.func @transform_0(%arg0: i32) -> (i32, i32) {
    %c0_i32 = arith.constant 0 : i32
    %c0_i32_0 = arith.constant 0 : i32
    return %arg0, %c0_i32 : i32, i32
  }
  func.func @transform_1(%arg0: i32) -> (i32, i32) {
    %c0_i32 = arith.constant 0 : i32
    %c0_i32_0 = arith.constant 0 : i32
    %c0_i32_1 = arith.constant 0 : i32
    return %c0_i32, %c0_i32_0 : i32, i32
  }
  func.func @transform_2(%arg0: i32) -> (i32, i32) {
    %c0_i32 = arith.constant 0 : i32
    %c0_i32_0 = arith.constant 0 : i32
    %c0_i32_1 = arith.constant 0 : i32
    return %c0_i32, %c0_i32_0 : i32, i32
  }
  func.func @transform_3(%arg0: i32) -> (i32, i32) {
    %c0_i32 = arith.constant 0 : i32
    %c0_i32_0 = arith.constant 0 : i32
    %c0_i32_1 = arith.constant 0 : i32
    return %c0_i32, %c0_i32_0 : i32, i32
  }
  func.func @transform_4(%arg0: i32) -> (i32, i32) {
    %c0_i32 = arith.constant 0 : i32
    %c0_i32_0 = arith.constant 0 : i32
    %c0_i32_1 = arith.constant 0 : i32
    return %c0_i32, %c0_i32_0 : i32, i32
  }
  func.func @transform_5(%arg0: i32) -> (i32, i32) {
    %c0_i32 = arith.constant 0 : i32
    %c0_i32_0 = arith.constant 0 : i32
    return %arg0, %c0_i32 : i32, i32
  }
}

</mosaic_0001>

<llo_original>
// kernel: tpu_custom_call.1
$region0: #{tpu_custom_call.1}
  #allocation0 [shape = 'u32[]', space=smem, size = 0x4, offset = 0x4, fixed_abs, tag = 'smem constant byte address 0x4 - core index']
  #allocation1 [shape = 'u32[144,128]{1,0:T(1,128)}', space=vmem, size = 0x12000, scoped, tag = 'internal scratch']
  %s0 = inlined_call_operand.hbm [shape: f32[8,32], index: 0, kind: input, shape index: {}]
  %s1 = inlined_call_operand.hbm [shape: bf16[32,32], index: 1, kind: input, shape index: {}]
  %s2 = inlined_call_operand.hbm [shape: bf16[32,32], index: 2, kind: input, shape index: {}]
  %s3 = inlined_call_operand.hbm [shape: bf16[32,128], index: 3, kind: input, shape index: {}]
  %s4 = inlined_call_operand.vmem [shape: f32[3,128], index: 4, kind: input, shape index: {}]
  %s5 = inlined_call_operand.hbm [shape: f32[8,128], index: 5, kind: output, shape index: {}]
  %s6 = sld [smem:[#allocation0]]
  $region46: #{tpu_custom_call.1} parent=0
    _
  %s8 = ssub.s32 1, %s6
  %s9 = scalar_select 0, %s8, %s6
  $region1: #{tpu_custom_call.1} parent=0
    #allocation2 [shape = 'u8[4096]{0}', space=vmem, size = 0x1000, scoped, tag = 'input window, operand 0, single buffered']
    #allocation3 [shape = 's32[1]{0}', space=sflag, size = 0x4, scoped, tag = 'scoped memory for tpu_custom_call.1']
    #allocation4 [shape = 's32[1]{0}', space=sflag, size = 0x4, scoped, tag = 'scoped memory for tpu_custom_call.1']
    #allocation5 [shape = 'u8[8192]{0}', space=vmem, size = 0x2000, scoped, tag = 'input window, operand 1, single buffered']
    #allocation6 [shape = 's32[1]{0}', space=sflag, size = 0x4, scoped, tag = 'scoped memory for tpu_custom_call.1']
    #allocation7 [shape = 'u8[8192]{0}', space=vmem, size = 0x2000, scoped, tag = 'input window, operand 2, single buffered']
    #allocation8 [shape = 'u8[8192]{0}', space=vmem, size = 0x2000, scoped, tag = 'input window, operand 3, single buffered']
    #allocation9 [shape = 's32[1]{0}', space=sflag, size = 0x4, scoped, tag = 'scoped memory for tpu_custom_call.1']
    #allocation10 [shape = 'u8[4096]{0}', space=vmem, size = 0x1000, scoped, tag = 'output window, operand 0, single buffered']
    %10 = vsyncpa [#allocation3], 0
    %11 = vsyncpa [#allocation6], 0
    %12 = vsyncpa [#allocation9], 0
    %13 = vsyncpa [#allocation4], 0
    // Predicated region
    $region2: #{tpu_custom_call.1} parent=1 // pred_check
      _
    $region3: #{tpu_custom_call.1} parent=1 // pred_check_branch
      %15 = sbr.rel (0) target = $region5
    $region4: #{tpu_custom_call.1} parent=1 // pred_region
      %s17 = ssub.s32 128, 128
      %18 = vsyncadd [#allocation3], %s17
      %s20 = sshll.u32 [#allocation2], 4
      %s21 = int_to_ptr.vmem [resolvable:$true] %s20
      %23 = dma.hbm_to_vmem [thread:$0]  %s0, 128, %s21, [#allocation3]
    $region5: #{tpu_custom_call.1} parent=1 // pred_fallthru
      _
    // Predicated region
    $region6: #{tpu_custom_call.1} parent=1 // pred_check
      _
    $region7: #{tpu_custom_call.1} parent=1 // pred_check_branch
      %25 = sbr.rel (0) target = $region9
    $region8: #{tpu_custom_call.1} parent=1 // pred_region
      %s27 = ssub.s32 256, 256
      %28 = vsyncadd [#allocation6], %s27
      %s29 = sshll.u32 [#allocation5], 4
      %s30 = int_to_ptr.vmem [resolvable:$true] %s29
      %35 = dma.hbm_to_vmem [thread:$0]  %s1, 256, %s30, [#allocation6], 64, 64, 4
    $region9: #{tpu_custom_call.1} parent=1 // pred_fallthru
      _
    // Predicated region
    $region10: #{tpu_custom_call.1} parent=1 // pred_check
      _
    $region11: #{tpu_custom_call.1} parent=1 // pred_check_branch
      %37 = sbr.rel (0) target = $region13
    $region12: #{tpu_custom_call.1} parent=1 // pred_region
      %s39 = ssub.s32 256, 256
      %40 = vsyncadd [#allocation6], %s39
      %s41 = sshll.u32 [#allocation7], 4
      %s42 = int_to_ptr.vmem [resolvable:$true] %s41
      %47 = dma.hbm_to_vmem [thread:$0]  %s2, 256, %s42, [#allocation6], 64, 64, 4
    $region13: #{tpu_custom_call.1} parent=1 // pred_fallthru
      _
    // Predicated region
    $region14: #{tpu_custom_call.1} parent=1 // pred_check
      _
    $region15: #{tpu_custom_call.1} parent=1 // pred_check_branch
      %49 = sbr.rel (0) target = $region17
    $region16: #{tpu_custom_call.1} parent=1 // pred_region
      %s51 = ssub.s32 256, 256
      %52 = vsyncadd [#allocation9], %s51
      %s53 = sshll.u32 [#allocation8], 4
      %s54 = int_to_ptr.vmem [resolvable:$true] %s53
      %59 = dma.hbm_to_vmem [thread:$0]  %s3, 256, %s54, [#allocation9], 64, 64, 4
    $region17: #{tpu_custom_call.1} parent=1 // pred_fallthru
      _
    // Predicated region
    $region18: #{tpu_custom_call.1} parent=1 // pred_check
      _
    $region19: #{tpu_custom_call.1} parent=1 // pred_check_branch
      %61 = sbr.rel (0) target = $region21
    $region20: #{tpu_custom_call.1} parent=1 // pred_region
      _
    $region21: #{tpu_custom_call.1} parent=1 // pred_fallthru
      _
    // Predicated region
    $region22: #{tpu_custom_call.1} parent=1 // pred_check
      _
    $region23: #{tpu_custom_call.1} parent=1 // pred_check_branch
      %63 = sbr.rel (0) target = $region25
    $region24: #{tpu_custom_call.1} parent=1 // pred_region
      %64 = dma.done [#allocation3], 128
    $region25: #{tpu_custom_call.1} parent=1 // pred_fallthru
      _
    // Predicated region
    $region26: #{tpu_custom_call.1} parent=1 // pred_check
      _
    $region27: #{tpu_custom_call.1} parent=1 // pred_check_branch
      %66 = sbr.rel (0) target = $region29
    $region28: #{tpu_custom_call.1} parent=1 // pred_region
      %67 = dma.done [#allocation6], 256
    $region29: #{tpu_custom_call.1} parent=1 // pred_fallthru
      _
    // Predicated region
    $region30: #{tpu_custom_call.1} parent=1 // pred_check
      _
    $region31: #{tpu_custom_call.1} parent=1 // pred_check_branch
      %69 = sbr.rel (0) target = $region33
    $region32: #{tpu_custom_call.1} parent=1 // pred_region
      %70 = dma.done [#allocation6], 256
    $region33: #{tpu_custom_call.1} parent=1 // pred_fallthru
      _
    // Predicated region
    $region34: #{tpu_custom_call.1} parent=1 // pred_check
      _
    $region35: #{tpu_custom_call.1} parent=1 // pred_check_branch
      %72 = sbr.rel (0) target = $region37
    $region36: #{tpu_custom_call.1} parent=1 // pred_region
      %73 = dma.done [#allocation9], 256
    $region37: #{tpu_custom_call.1} parent=1 // pred_fallthru
      _
    %v75 = vld [vmem:[#allocation2] sm:$0xff]
    %v76 = vpack.c.bf16 %v75, %v75
    %v77 = vld [vmem:[%s4] sm:$0x1]
    %v78 = vld [vmem:[%s4 + $0x1] sm:$0x1]
    %v79 = vld [vmem:[%s4 + $0x2] sm:$0x1]
    %v80 = vld [vmem:[#allocation5] sm:$0xf]
    %v81 = vld [vmem:[#allocation5 + $0x4] sm:$0xf]
    %v82 = vld [vmem:[#allocation5 + $0x8] sm:$0xf]
    %v83 = vld [vmem:[#allocation5 + $0xc] sm:$0xf]
    %v84 = vlaneseq
    %v85 = vshrl.u32 %v84, 7
    %v86 = vsub.s32 0, %v85
    %v87 = vrot.slane %v77, %v86
    %v92 = vunpack.c.l.b16 %v80
    %v93 = vunpack.c.l.b16 %v81
    %v94 = vunpack.c.l.b16 %v82
    %v95 = vunpack.c.l.b16 %v83
    %v96 = vpack.c.b16 %v93, %v92
    %v97 = vpack.c.b16 %v95, %v94
    %vm100 = vcmask 261120
    %v102 = vsel %vm100, %v76, 0
    %104 = vmatprep.subr.bf16.mxu0 0
    %105 = vmatpush1.bf16.msra.mxu0 %v96
    %106 = vmatprep.subr.bf16.mxu0 0
    %107 = vmatpush1.bf16.msra.mxu0 %v97
    %108 = vmatprep.subr.bf16.mxu0 0
    %109 = vmatpush1.bf16.msra.mxu0 0
    %110 = vmatprep.subr.bf16.mxu0 0
    %111 = vmatpush1.bf16.msra.mxu0 0
    %112 = vmatprep.subr.bf16.mxu0 0
    %113 = vmatpush1.bf16.msra.mxu0 0
    %114 = vmatprep.subr.bf16.mxu0 0
    %115 = vmatpush1.bf16.msra.mxu0 0
    %116 = vmatprep.subr.bf16.mxu0 0
    %117 = vmatpush1.bf16.msra.mxu0 0
    %118 = vmatprep.subr.bf16.mxu0 0
    %119 = vmatpush1.bf16.msra.mxu0 0
    %120 = vmatprep.subr.bf16.mxu0 0
    %121 = vmatpush1.bf16.msra.mxu0 0
    %122 = vmatprep.subr.bf16.mxu0 0
    %123 = vmatpush1.bf16.msra.mxu0 0
    %124 = vmatprep.subr.bf16.mxu0 0
    %125 = vmatpush1.bf16.msra.mxu0 0
    %126 = vmatprep.subr.bf16.mxu0 0
    %127 = vmatpush1.bf16.msra.mxu0 0
    %128 = vmatprep.subr.bf16.mxu0 0
    %129 = vmatpush1.bf16.msra.mxu0 0
    %130 = vmatprep.subr.bf16.mxu0 0
    %131 = vmatpush1.bf16.msra.mxu0 0
    %132 = vmatprep.subr.bf16.mxu0 0
    %133 = vmatpush1.bf16.msra.mxu0 0
    %134 = vmatprep.subr.bf16.mxu0 0
    %135 = vmatpush1.bf16.msra.mxu0 0
    %136 = vmatprep.mubr.bf16.mxu0 0
    %137 = vmatmul.mubr.bf16.gmra.mrb[0].mxu0 %v102
    %v138 = vpop.f32.mrb[0].mxu0
    %v139 = vadd.f32 %v87, %v138
    %v140 = vpop.f32.mrb[0].mxu0
    %v141 = vpop.f32.mrb[0].mxu0
    %v142 = vpop.f32.mrb[0].mxu0
    %143 = vdwg.mxu0
    %v144 = vmax.f32 %v139, 0.0
    %v145 = vpack.c.bf16 %v144, %v144
    %v146 = vld [vmem:[#allocation7] sm:$0xf]
    %v147 = vld [vmem:[#allocation7 + $0x4] sm:$0xf]
    %v148 = vld [vmem:[#allocation7 + $0x8] sm:$0xf]
    %v149 = vld [vmem:[#allocation7 + $0xc] sm:$0xf]
    %v150 = vlaneseq
    %v151 = vshrl.u32 %v150, 7
    %v152 = vsub.s32 0, %v151
    %v153 = vrot.slane %v78, %v152
    %v158 = vunpack.c.l.b16 %v146
    %v159 = vunpack.c.l.b16 %v147
    %v160 = vunpack.c.l.b16 %v148
    %v161 = vunpack.c.l.b16 %v149
    %v162 = vpack.c.b16 %v159, %v158
    %v163 = vpack.c.b16 %v161, %v160
    %v167 = vsel %vm100, %v145, 0
    %169 = vmatprep.subr.bf16.mxu0 0
    %170 = vmatpush1.bf16.msra.mxu0 %v162
    %171 = vmatprep.subr.bf16.mxu0 0
    %172 = vmatpush1.bf16.msra.mxu0 %v163
    %173 = vmatprep.subr.bf16.mxu0 0
    %174 = vmatpush1.bf16.msra.mxu0 0
    %175 = vmatprep.subr.bf16.mxu0 0
    %176 = vmatpush1.bf16.msra.mxu0 0
    %177 = vmatprep.subr.bf16.mxu0 0
    %178 = vmatpush1.bf16.msra.mxu0 0
    %179 = vmatprep.subr.bf16.mxu0 0
    %180 = vmatpush1.bf16.msra.mxu0 0
    %181 = vmatprep.subr.bf16.mxu0 0
    %182 = vmatpush1.bf16.msra.mxu0 0
    %183 = vmatprep.subr.bf16.mxu0 0
    %184 = vmatpush1.bf16.msra.mxu0 0
    %185 = vmatprep.subr.bf16.mxu0 0
    %186 = vmatpush1.bf16.msra.mxu0 0
    %187 = vmatprep.subr.bf16.mxu0 0
    %188 = vmatpush1.bf16.msra.mxu0 0
    %189 = vmatprep.subr.bf16.mxu0 0
    %190 = vmatpush1.bf16.msra.mxu0 0
    %191 = vmatprep.subr.bf16.mxu0 0
    %192 = vmatpush1.bf16.msra.mxu0 0
    %193 = vmatprep.subr.bf16.mxu0 0
    %194 = vmatpush1.bf16.msra.mxu0 0
    %195 = vmatprep.subr.bf16.mxu0 0
    %196 = vmatpush1.bf16.msra.mxu0 0
    %197 = vmatprep.subr.bf16.mxu0 0
    %198 = vmatpush1.bf16.msra.mxu0 0
    %199 = vmatprep.subr.bf16.mxu0 0
    %200 = vmatpush1.bf16.msra.mxu0 0
    %201 = vmatprep.mubr.bf16.mxu0 0
    %202 = vmatmul.mubr.bf16.gmra.mrb[0].mxu0 %v167
    %v203 = vpop.f32.mrb[0].mxu0
    %v204 = vadd.f32 %v153, %v203
    %v205 = vpop.f32.mrb[0].mxu0
    %v206 = vpop.f32.mrb[0].mxu0
    %v207 = vpop.f32.mrb[0].mxu0
    %208 = vdwg.mxu0
    %v209 = vmax.f32 %v204, 0.0
    %v210 = vpack.c.bf16 %v209, %v209
    %v211 = vld [vmem:[#allocation8] sm:$0xf]
    %v212 = vld [vmem:[#allocation8 + $0x4] sm:$0xf]
    %v213 = vld [vmem:[#allocation8 + $0x8] sm:$0xf]
    %v214 = vld [vmem:[#allocation8 + $0xc] sm:$0xf]
    %v215 = vlaneseq
    %v216 = vshrl.u32 %v215, 7
    %v217 = vsub.s32 0, %v216
    %v218 = vrot.slane %v79, %v217
    %v223 = vunpack.c.l.b16 %v211
    %v224 = vunpack.c.l.b16 %v212
    %v225 = vunpack.c.l.b16 %v213
    %v226 = vunpack.c.l.b16 %v214
    %v227 = vpack.c.b16 %v224, %v223
    %v228 = vpack.c.b16 %v226, %v225
    %v232 = vsel %vm100, %v210, 0
    %234 = vmatprep.subr.bf16.mxu0 0
    %235 = vmatpush1.bf16.msra.mxu0 %v227
    %236 = vmatprep.subr.bf16.mxu0 0
    %237 = vmatpush1.bf16.msra.mxu0 %v228
    %238 = vmatprep.subr.bf16.mxu0 0
    %239 = vmatpush1.bf16.msra.mxu0 0
    %240 = vmatprep.subr.bf16.mxu0 0
    %241 = vmatpush1.bf16.msra.mxu0 0
    %242 = vmatprep.subr.bf16.mxu0 0
    %243 = vmatpush1.bf16.msra.mxu0 0
    %244 = vmatprep.subr.bf16.mxu0 0
    %245 = vmatpush1.bf16.msra.mxu0 0
    %246 = vmatprep.subr.bf16.mxu0 0
    %247 = vmatpush1.bf16.msra.mxu0 0
    %248 = vmatprep.subr.bf16.mxu0 0
    %249 = vmatpush1.bf16.msra.mxu0 0
    %250 = vmatprep.subr.bf16.mxu0 0
    %251 = vmatpush1.bf16.msra.mxu0 0
    %252 = vmatprep.subr.bf16.mxu0 0
    %253 = vmatpush1.bf16.msra.mxu0 0
    %254 = vmatprep.subr.bf16.mxu0 0
    %255 = vmatpush1.bf16.msra.mxu0 0
    %256 = vmatprep.subr.bf16.mxu0 0
    %257 = vmatpush1.bf16.msra.mxu0 0
    %258 = vmatprep.subr.bf16.mxu0 0
    %259 = vmatpush1.bf16.msra.mxu0 0
    %260 = vmatprep.subr.bf16.mxu0 0
    %261 = vmatpush1.bf16.msra.mxu0 0
    %262 = vmatprep.subr.bf16.mxu0 0
    %263 = vmatpush1.bf16.msra.mxu0 0
    %264 = vmatprep.subr.bf16.mxu0 0
    %265 = vmatpush1.bf16.msra.mxu0 0
    %266 = vmatprep.mubr.bf16.mxu0 0
    %267 = vmatmul.mubr.bf16.gmra.mrb[0].mxu0 %v232
    %v268 = vpop.f32.mrb[0].mxu0
    %v269 = vadd.f32 %v218, %v268
    %v270 = vpop.f32.mrb[0].mxu0
    %v271 = vpop.f32.mrb[0].mxu0
    %v272 = vpop.f32.mrb[0].mxu0
    %273 = vdwg.mxu0
    %v274 = vsub.f32 0.0, %v269
    %v275 = vmul.f32 %v274, 1.442695
    %v276 = vpow.pop %v275
    %v277 = vadd.f32 %v276, 1.0
    %v278 = vrcp.pop %v277
    %279 = vst [vmem:[#allocation10] sm:$0xff] %v278
    // Predicated region
    $region38: #{tpu_custom_call.1} parent=1 // pred_check
      _
    $region39: #{tpu_custom_call.1} parent=1 // pred_check_branch
      %281 = sbr.rel (0) target = $region41
    $region40: #{tpu_custom_call.1} parent=1 // pred_region
      %s283 = ssub.s32 128, 128
      %284 = vsyncadd [#allocation4], %s283
      %s286 = sshll.u32 [#allocation10], 4
      %s287 = int_to_ptr.vmem [resolvable:$true] %s286
      %289 = dma.vmem_to_hbm [thread:$0]  %s287, 128, %s5, [#allocation4]
    $region41: #{tpu_custom_call.1} parent=1 // pred_fallthru
      _
    // Predicated region
    $region42: #{tpu_custom_call.1} parent=1 // pred_check
      _
    $region43: #{tpu_custom_call.1} parent=1 // pred_check_branch
      %291 = sbr.rel (0) target = $region45
    $region44: #{tpu_custom_call.1} parent=1 // pred_region
      %292 = dma.done [#allocation4], 128
    $region45: #{tpu_custom_call.1} parent=1 // pred_fallthru
      _
    %293 = vsyncpa [#allocation3], 1
    %294 = vsyncpa [#allocation6], 1
    %295 = vsyncpa [#allocation9], 1
    %296 = vsyncpa [#allocation4], 1

</llo_original>
